<compile_context>
chip_gen: v6e
topology: v6e:2x2x1
jax: 0.10.0
libtpu: 0.0.40
codegen_flags: <defaults>
</compile_context>

<pallas_src>
import jax
import jax.numpy as jnp
from jax.experimental import pallas as pl
from jax.experimental.pallas import tpu as pltpu


# ------------------------------ fused kernel --------------------------------


def _fused_ae_kernel(x_ref, win_ref, bin_ref, w2_ref, b2_ref, w3_ref, b3_ref,
                     wout_ref, bout_ref, g_ref, gt_ref, o_ref):
    """(embed+enc1) -> tanh -> enc2 -> tanh -> dec1 -> tanh -> (dec2+deembed)
    -> per-position softmax, all on one batch tile resident in VMEM."""

    def dot(a, b):
        return jnp.dot(a, b, preferred_element_type=jnp.float32)

    x = x_ref[...]                                          # (tb, taille*21)

    # Encoder (Embedding folded into the first dense layer).
    h1 = jnp.tanh(dot(x, win_ref[...]) + bin_ref[...])      # (tb, 50*AA)
    # TODO(synk): nn.Dropout(0.3) treated as identity (eval-mode semantics).
    lat = jnp.tanh(dot(h1, w2_ref[...]) + b2_ref[...])      # (tb, latent_dim)

    # Decoder (deEmbedding folded into the last dense layer).
    h2 = jnp.tanh(dot(lat, w3_ref[...]) + b3_ref[...])      # (tb, 50*AA)
    # TODO(synk): second nn.Dropout(0.3) also treated as identity.
    logits = dot(h2, wout_ref[...]) + bout_ref[...]         # (tb, taille*21)

    # Per-position softmax (one softmax per group of 21 consecutive lanes).
    # A single row-wise max is mathematically identical to per-group maxes for
    # softmax stability; group sums and the broadcast of their reciprocals go
    # through the MXU with the exact 0/1 one-hot group matrix G (so the
    # broadcast step adds no rounding).
    m = jnp.max(logits, axis=-1, keepdims=True)             # (tb, 1)
    e = jnp.exp(logits - m)                                 # (tb, taille*21)
    gs = dot(e, g_ref[...])                                 # (tb, taille)
    inv = pl.reciprocal(gs)                                 # exact (1e-5 parity)
    o_ref[...] = e * dot(inv, gt_ref[...])                  # (tb, taille*21)


# --------------------------- parameter handling ------------------------------


def init_params(key, taille, AA_latent, latent_dim):
    """Deterministic PyTorch-style Linear init (uniform +-1/sqrt(fan_in))."""

    def lin(k, fan_in, fan_out):
        kw, kb = jax.random.split(k)
        bound = 1.0 / jnp.sqrt(jnp.float32(fan_in))
        W = jax.random.uniform(kw, (fan_in, fan_out), jnp.float32, -bound, bound)
        b = jax.random.uniform(kb, (1, fan_out), jnp.float32, -bound, bound)
        return W, b

    keys = jax.random.split(key, 6)
    return {
        "emb":   lin(keys[0], 21, AA_latent),                       # Embedding.linear
        "enc1":  lin(keys[1], AA_latent * taille, AA_latent * 50),  # encoder Linear 1
        "enc2":  lin(keys[2], AA_latent * 50, latent_dim),          # encoder Linear 2
        "dec1":  lin(keys[3], latent_dim, AA_latent * 50),          # decoder Linear 1
        "dec2":  lin(keys[4], AA_latent * 50, AA_latent * taille),  # decoder Linear 2
        "deemb": lin(keys[5], AA_latent, 21),                       # deEmbedding.linear
    }


def _block_diag(w, n):
    """(a, b) -> (n*a, n*b) block-diagonal repetition of w (exact zeros off-diag)."""
    a, b = w.shape
    eye = jnp.eye(n, dtype=w.dtype)
    return (eye[:, None, :, None] * w[None, :, None, :]).reshape(n * a, n * b)


def _group_matrices(taille, d_token=21):
    """One-hot lane->group matrix G (taille*21, taille) and its transpose."""
    n = taille * d_token
    rows = jnp.arange(n) // d_token
    G = (rows[:, None] == jnp.arange(taille)[None, :]).astype(jnp.float32)
    return G, G.T


def _expand_params(params, taille):
    """Kernel-ready weights: fold Identity-activation embed/deembed into their
    dense neighbours (exact algebraic fold), plus the softmax group matrices."""
    We, be = params["emb"]     # (21, AA), (1, AA)
    W1, b1 = params["enc1"]    # (AA*taille, 50*AA)
    W2, b2 = params["enc2"]
    W3, b3 = params["dec1"]
    W4, b4 = params["dec2"]    # (50*AA, AA*taille)
    Wd, bd = params["deemb"]   # (AA, 21), (1, 21)

    WeB = _block_diag(We, taille)          # (taille*21, taille*AA)
    beB = jnp.tile(be, (1, taille))        # (1, taille*AA)
    WdB = _block_diag(Wd, taille)          # (taille*AA, taille*21)
    bdB = jnp.tile(bd, (1, taille))        # (1, taille*21)

    W_in = WeB @ W1                        # (taille*21, 50*AA)
    b_in = beB @ W1 + b1                   # (1, 50*AA)
    W_out = W4 @ WdB                       # (50*AA, taille*21)
    b_out = b4 @ WdB + bdB                 # (1, taille*21)

    G, GT = _group_matrices(taille)
    return (W_in, b_in, W2, b2, W3, b3, W_out, b_out, G, GT)


# ------------------------------ forward pass ---------------------------------


def _round_up(n, m):
    return ((n + m - 1) // m) * m


def _cdiv(a, b):
    return -(-a // b)


def autoencoder_forward(params, x, taille, AA_latent, *, tile_b=512):
    """Forward of Autoencoder_v1: x (B, taille*21) -> probabilities (B, taille*21)."""
    B, f_in = x.shape
    assert f_in == taille * 21
    f_out = taille * 21

    kparams = _expand_params(params, taille)

    # Batch tiling: large tiles amortize the ~0.35us/step grid overhead, but
    # for mid-size batches cap the tile at ceil(B/2) so the "parallel" batch
    # axis always has >=2 grid steps (keeps both v7x TensorCores busy).
    tb = min(tile_b, _round_up(max(B, 1), 8))
    if B > 8:
        tb = min(tb, _round_up(_cdiv(B, 2), 8))
    b_pad = _round_up(B, tb)
    if b_pad != B:
        x = jnp.pad(x, ((0, b_pad - B), (0, 0)))

    def _resident_spec(arr):
        # Whole-array block, constant index_map -> stays resident in VMEM.
        nd = arr.ndim
        return pl.BlockSpec(arr.shape, lambda i, _nd=nd: (0,) * _nd)

    out = pl.pallas_call(
        _fused_ae_kernel,
        out_shape=jax.ShapeDtypeStruct((b_pad, f_out), jnp.float32),
        grid=(b_pad // tb,),
        in_specs=[pl.BlockSpec((tb, f_in), lambda i: (i, 0))]
        + [_resident_spec(a) for a in kparams],
        out_specs=pl.BlockSpec((tb, f_out), lambda i: (i, 0)),
        compiler_params=pltpu.CompilerParams(
            dimension_semantics=("parallel",),  # shard batch tiles over v7x's 2 TCs
        ),
    )(x, *kparams)
    return out[:B]


# --------------------------- pure-JAX reference -------------------------------


def _reference_forward(params, x, taille, AA_latent):
    B = x.shape[0]
    We, be = params["emb"]
    W1, b1 = params["enc1"]
    W2, b2 = params["enc2"]
    W3, b3 = params["dec1"]
    W4, b4 = params["dec2"]
    Wd, bd = params["deemb"]

    s = x.reshape(B, taille, 21)
    e = (s @ We + be).reshape(B, taille * AA_latent)      # Embedding (Identity)
    h = jnp.tanh(e @ W1 + b1)
    lat = jnp.tanh(h @ W2 + b2)                           # encoder output
    h = jnp.tanh(lat @ W3 + b3)
    d = h @ W4 + b4                                       # decoder core (Identity)
    logits = d.reshape(B, taille, AA_latent) @ Wd + bd    # deEmbedding
    probs = jax.nn.softmax(logits, axis=-1)
    return probs.reshape(B, taille * 21)


# ---------------------------------- main --------------------------------------

if __name__ == "__main__":
    taille = 8        # number of sequence positions (branches)
    AA_latent = 4     # per-position embedding size
    latent_dim = 50   # module default
    B = 2

    key = jax.random.PRNGKey(0)
    k_param, k_x = jax.random.split(key)

    params = init_params(k_param, taille, AA_latent, latent_dim)
    x = jax.random.uniform(k_x, (B, taille * 21), jnp.float32)

    out = autoencoder_forward(params, x, taille, AA_latent)
    out = jax.block_until_ready(out)

    ref = _reference_forward(params, x, taille, AA_latent)
    assert out.shape == (B, taille * 21)
    assert jnp.allclose(out, ref, atol=1e-5, rtol=1e-5), float(
        jnp.max(jnp.abs(out - ref))
    )

    print("KERNEL_OK")
</pallas_src>

<mosaic_0001>
module attributes {stable_mosaic.version = 11 : i64} {
  func.func @_fused_ae_kernel(%arg0: i32, %arg1: memref<8x168xf32, #tpu.memory_space<vmem>>, %arg2: memref<168x200xf32, #tpu.memory_space<vmem>>, %arg3: memref<1x200xf32, #tpu.memory_space<vmem>>, %arg4: memref<200x50xf32, #tpu.memory_space<vmem>>, %arg5: memref<1x50xf32, #tpu.memory_space<vmem>>, %arg6: memref<50x200xf32, #tpu.memory_space<vmem>>, %arg7: memref<1x200xf32, #tpu.memory_space<vmem>>, %arg8: memref<200x168xf32, #tpu.memory_space<vmem>>, %arg9: memref<1x168xf32, #tpu.memory_space<vmem>>, %arg10: memref<168x8xf32, #tpu.memory_space<vmem>>, %arg11: memref<8x168xf32, #tpu.memory_space<vmem>>, %arg12: memref<8x168xf32, #tpu.memory_space<vmem>>) attributes {dimension_semantics = [#tpu.dimension_semantics<parallel>], iteration_bounds = array<i64: 1>, scalar_prefetch = 0 : i64, scratch_operands = 0 : i64, tpu.core_type = #tpu.core_type<tc>, window_params = [{transform_indices = @transform_0, window_bounds = array<i64: 8, 168>}, {pipeline_mode = #tpu.pipeline_mode<synchronous>, transform_indices = @transform_1, window_bounds = array<i64: 168, 200>}, {pipeline_mode = #tpu.pipeline_mode<synchronous>, transform_indices = @transform_2, window_bounds = array<i64: 1, 200>}, {pipeline_mode = #tpu.pipeline_mode<synchronous>, transform_indices = @transform_3, window_bounds = array<i64: 200, 50>}, {pipeline_mode = #tpu.pipeline_mode<synchronous>, transform_indices = @transform_4, window_bounds = array<i64: 1, 50>}, {pipeline_mode = #tpu.pipeline_mode<synchronous>, transform_indices = @transform_5, window_bounds = array<i64: 50, 200>}, {pipeline_mode = #tpu.pipeline_mode<synchronous>, transform_indices = @transform_6, window_bounds = array<i64: 1, 200>}, {pipeline_mode = #tpu.pipeline_mode<synchronous>, transform_indices = @transform_7, window_bounds = array<i64: 200, 168>}, {pipeline_mode = #tpu.pipeline_mode<synchronous>, transform_indices = @transform_8, window_bounds = array<i64: 1, 168>}, {pipeline_mode = #tpu.pipeline_mode<synchronous>, transform_indices = @transform_9, window_bounds = array<i64: 168, 8>}, {pipeline_mode = #tpu.pipeline_mode<synchronous>, transform_indices = @transform_10, window_bounds = array<i64: 8, 168>}, {transform_indices = @transform_11, window_bounds = array<i64: 8, 168>}]} {
    %c0 = arith.constant 0 : index
    %c0_0 = arith.constant 0 : index
    %0 = vector.load %arg1[%c0, %c0_0] : memref<8x168xf32, #tpu.memory_space<vmem>>, vector<8x168xf32>
    %c0_1 = arith.constant 0 : index
    %c0_2 = arith.constant 0 : index
    %1 = vector.load %arg2[%c0_1, %c0_2] : memref<168x200xf32, #tpu.memory_space<vmem>>, vector<168x200xf32>
    %cst = arith.constant dense<0.000000e+00> : vector<8x200xf32>
    %2 = tpu.matmul %0, %1, %cst {dimension_numbers = #tpu.dot_dimension_numbers<[1], [0], [0], [1], [0, 0, 1, 1], [], []>} : vector<8x168xf32>, vector<168x200xf32>, vector<8x200xf32> -> vector<8x200xf32>
    %c0_3 = arith.constant 0 : index
    %c0_4 = arith.constant 0 : index
    %3 = vector.load %arg3[%c0_3, %c0_4] : memref<1x200xf32, #tpu.memory_space<vmem>>, vector<1x200xf32>
    %4 = vector.broadcast %3 : vector<1x200xf32> to vector<8x200xf32>
    %5 = arith.addf %2, %4 : vector<8x200xf32>
    %6 = math.tanh %5 : vector<8x200xf32>
    %c0_5 = arith.constant 0 : index
    %c0_6 = arith.constant 0 : index
    %7 = vector.load %arg4[%c0_5, %c0_6] : memref<200x50xf32, #tpu.memory_space<vmem>>, vector<200x50xf32>
    %cst_7 = arith.constant dense<0.000000e+00> : vector<8x50xf32>
    %8 = tpu.matmul %6, %7, %cst_7 {dimension_numbers = #tpu.dot_dimension_numbers<[1], [0], [0], [1], [0, 0, 1, 1], [], []>} : vector<8x200xf32>, vector<200x50xf32>, vector<8x50xf32> -> vector<8x50xf32>
    %c0_8 = arith.constant 0 : index
    %c0_9 = arith.constant 0 : index
    %9 = vector.load %arg5[%c0_8, %c0_9] : memref<1x50xf32, #tpu.memory_space<vmem>>, vector<1x50xf32>
    %10 = vector.broadcast %9 : vector<1x50xf32> to vector<8x50xf32>
    %11 = arith.addf %8, %10 : vector<8x50xf32>
    %12 = math.tanh %11 : vector<8x50xf32>
    %c0_10 = arith.constant 0 : index
    %c0_11 = arith.constant 0 : index
    %13 = vector.load %arg6[%c0_10, %c0_11] : memref<50x200xf32, #tpu.memory_space<vmem>>, vector<50x200xf32>
    %cst_12 = arith.constant dense<0.000000e+00> : vector<8x200xf32>
    %14 = tpu.matmul %12, %13, %cst_12 {dimension_numbers = #tpu.dot_dimension_numbers<[1], [0], [0], [1], [0, 0, 1, 1], [], []>} : vector<8x50xf32>, vector<50x200xf32>, vector<8x200xf32> -> vector<8x200xf32>
    %c0_13 = arith.constant 0 : index
    %c0_14 = arith.constant 0 : index
    %15 = vector.load %arg7[%c0_13, %c0_14] : memref<1x200xf32, #tpu.memory_space<vmem>>, vector<1x200xf32>
    %16 = vector.broadcast %15 : vector<1x200xf32> to vector<8x200xf32>
    %17 = arith.addf %14, %16 : vector<8x200xf32>
    %18 = math.tanh %17 : vector<8x200xf32>
    %c0_15 = arith.constant 0 : index
    %c0_16 = arith.constant 0 : index
    %19 = vector.load %arg8[%c0_15, %c0_16] : memref<200x168xf32, #tpu.memory_space<vmem>>, vector<200x168xf32>
    %cst_17 = arith.constant dense<0.000000e+00> : vector<8x168xf32>
    %20 = tpu.matmul %18, %19, %cst_17 {dimension_numbers = #tpu.dot_dimension_numbers<[1], [0], [0], [1], [0, 0, 1, 1], [], []>} : vector<8x200xf32>, vector<200x168xf32>, vector<8x168xf32> -> vector<8x168xf32>
    %c0_18 = arith.constant 0 : index
    %c0_19 = arith.constant 0 : index
    %21 = vector.load %arg9[%c0_18, %c0_19] : memref<1x168xf32, #tpu.memory_space<vmem>>, vector<1x168xf32>
    %22 = vector.broadcast %21 : vector<1x168xf32> to vector<8x168xf32>
    %23 = arith.addf %20, %22 : vector<8x168xf32>
    %cst_20 = arith.constant dense<0xFF800000> : vector<8xf32>
    %24 = vector.multi_reduction <maximumf>, %23, %cst_20 [1] : vector<8x168xf32> to vector<8xf32>
    %25 = vector.shape_cast %24 : vector<8xf32> to vector<8x1xf32>
    %26 = vector.broadcast %25 : vector<8x1xf32> to vector<8x168xf32>
    %27 = arith.subf %23, %26 : vector<8x168xf32>
    %28 = math.exp %27 : vector<8x168xf32>
    %c0_21 = arith.constant 0 : index
    %c0_22 = arith.constant 0 : index
    %29 = vector.load %arg10[%c0_21, %c0_22] : memref<168x8xf32, #tpu.memory_space<vmem>>, vector<168x8xf32>
    %cst_23 = arith.constant dense<0.000000e+00> : vector<8x8xf32>
    %30 = tpu.matmul %28, %29, %cst_23 {dimension_numbers = #tpu.dot_dimension_numbers<[1], [0], [0], [1], [0, 0, 1, 1], [], []>} : vector<8x168xf32>, vector<168x8xf32>, vector<8x8xf32> -> vector<8x8xf32>
    %31 = tpu.reciprocal %30 : vector<8x8xf32> -> vector<8x8xf32>
    %c0_24 = arith.constant 0 : index
    %c0_25 = arith.constant 0 : index
    %32 = vector.load %arg11[%c0_24, %c0_25] : memref<8x168xf32, #tpu.memory_space<vmem>>, vector<8x168xf32>
    %cst_26 = arith.constant dense<0.000000e+00> : vector<8x168xf32>
    %33 = tpu.matmul %31, %32, %cst_26 {dimension_numbers = #tpu.dot_dimension_numbers<[1], [0], [0], [1], [0, 0, 1, 1], [], []>} : vector<8x8xf32>, vector<8x168xf32>, vector<8x168xf32> -> vector<8x168xf32>
    %34 = arith.mulf %28, %33 : vector<8x168xf32>
    %c0_27 = arith.constant 0 : index
    %c0_28 = arith.constant 0 : index
    %35 = vector.load %arg12[%c0_27, %c0_28] : memref<8x168xf32, #tpu.memory_space<vmem>>, vector<8x168xf32>
    tpu.vector_store %arg12[%c0_27, %c0_28], %34 {strides = array<i32>} : memref<8x168xf32, #tpu.memory_space<vmem>>, vector<8x168xf32>,
    return
  }
  func.func @transform_0(%arg0: i32) -> (i32, i32) {
    %c0_i32 = arith.constant 0 : i32
    %c0_i32_0 = arith.constant 0 : i32
    return %arg0, %c0_i32 : i32, i32
  }
  func.func @transform_1(%arg0: i32) -> (i32, i32) {
    %c0_i32 = arith.constant 0 : i32
    %c0_i32_0 = arith.constant 0 : i32
    %c0_i32_1 = arith.constant 0 : i32
    return %c0_i32, %c0_i32_0 : i32, i32
  }
  func.func @transform_2(%arg0: i32) -> (i32, i32) {
    %c0_i32 = arith.constant 0 : i32
    %c0_i32_0 = arith.constant 0 : i32
    %c0_i32_1 = arith.constant 0 : i32
    return %c0_i32, %c0_i32_0 : i32, i32
  }
  func.func @transform_3(%arg0: i32) -> (i32, i32) {
    %c0_i32 = arith.constant 0 : i32
    %c0_i32_0 = arith.constant 0 : i32
    %c0_i32_1 = arith.constant 0 : i32
    return %c0_i32, %c0_i32_0 : i32, i32
  }
  func.func @transform_4(%arg0: i32) -> (i32, i32) {
    %c0_i32 = arith.constant 0 : i32
    %c0_i32_0 = arith.constant 0 : i32
    %c0_i32_1 = arith.constant 0 : i32
    return %c0_i32, %c0_i32_0 : i32, i32
  }
  func.func @transform_5(%arg0: i32) -> (i32, i32) {
    %c0_i32 = arith.constant 0 : i32
    %c0_i32_0 = arith.constant 0 : i32
    %c0_i32_1 = arith.constant 0 : i32
    return %c0_i32, %c0_i32_0 : i32, i32
  }
  func.func @transform_6(%arg0: i32) -> (i32, i32) {
    %c0_i32 = arith.constant 0 : i32
    %c0_i32_0 = arith.constant 0 : i32
    %c0_i32_1 = arith.constant 0 : i32
    return %c0_i32, %c0_i32_0 : i32, i32
  }
  func.func @transform_7(%arg0: i32) -> (i32, i32) {
    %c0_i32 = arith.constant 0 : i32
    %c0_i32_0 = arith.constant 0 : i32
    %c0_i32_1 = arith.constant 0 : i32
    return %c0_i32, %c0_i32_0 : i32, i32
  }
  func.func @transform_8(%arg0: i32) -> (i32, i32) {
    %c0_i32 = arith.constant 0 : i32
    %c0_i32_0 = arith.constant 0 : i32
    %c0_i32_1 = arith.constant 0 : i32
    return %c0_i32, %c0_i32_0 : i32, i32
  }
  func.func @transform_9(%arg0: i32) -> (i32, i32) {
    %c0_i32 = arith.constant 0 : i32
    %c0_i32_0 = arith.constant 0 : i32
    %c0_i32_1 = arith.constant 0 : i32
    return %c0_i32, %c0_i32_0 : i32, i32
  }
  func.func @transform_10(%arg0: i32) -> (i32, i32) {
    %c0_i32 = arith.constant 0 : i32
    %c0_i32_0 = arith.constant 0 : i32
    %c0_i32_1 = arith.constant 0 : i32
    return %c0_i32, %c0_i32_0 : i32, i32
  }
  func.func @transform_11(%arg0: i32) -> (i32, i32) {
    %c0_i32 = arith.constant 0 : i32
    %c0_i32_0 = arith.constant 0 : i32
    return %arg0, %c0_i32 : i32, i32
  }
}

</mosaic_0001>

<llo_original>
// kernel: tpu_custom_call.1
$region0: #{tpu_custom_call.1}
  #allocation0 [shape = 'u32[]', space=smem, size = 0x4, offset = 0x4, fixed_abs, tag = 'smem constant byte address 0x4 - core index']
  #allocation1 [shape = 'u32[144,128]{1,0:T(1,128)}', space=vmem, size = 0x12000, scoped, tag = 'internal scratch']
  %s0 = inlined_call_operand.vmem [shape: f32[8,168], index: 0, kind: input, shape index: {}]
  %s1 = inlined_call_operand.vmem [shape: f32[168,200], index: 1, kind: input, shape index: {}]
  %s2 = inlined_call_operand.vmem [shape: f32[1,200], index: 2, kind: input, shape index: {}]
  %s3 = inlined_call_operand.vmem [shape: f32[200,50], index: 3, kind: input, shape index: {}]
  %s4 = inlined_call_operand.vmem [shape: f32[1,50], index: 4, kind: input, shape index: {}]
  %s5 = inlined_call_operand.vmem [shape: f32[50,200], index: 5, kind: input, shape index: {}]
  %s6 = inlined_call_operand.vmem [shape: f32[1,200], index: 6, kind: input, shape index: {}]
  %s7 = inlined_call_operand.vmem [shape: f32[200,168], index: 7, kind: input, shape index: {}]
  %s8 = inlined_call_operand.vmem [shape: f32[1,168], index: 8, kind: input, shape index: {}]
  %s9 = inlined_call_operand.vmem [shape: f32[168,8], index: 9, kind: input, shape index: {}]
  %s10 = inlined_call_operand.vmem [shape: f32[8,168], index: 10, kind: input, shape index: {}]
  %s11 = inlined_call_operand.hbm [shape: f32[8,168], index: 11, kind: output, shape index: {}]
  %s12 = sld [smem:[#allocation0]]
  $region54: #{tpu_custom_call.1} parent=0
    _
  %s14 = ssub.s32 1, %s12
  %s15 = scalar_select 0, %s14, %s12
  $region1: #{tpu_custom_call.1} parent=0
    #allocation2 [shape = 'u8[8192]{0}', space=vmem, size = 0x2000, scoped, tag = 'output window, operand 0, single buffered']
    #allocation3 [shape = 's32[1]{0}', space=sflag, size = 0x4, scoped, tag = 'scoped memory for tpu_custom_call.1']
    %16 = vsyncpa [#allocation3], 0
    // Predicated region
    $region2: #{tpu_custom_call.1} parent=1 // pred_check
      _
    $region3: #{tpu_custom_call.1} parent=1 // pred_check_branch
      %18 = sbr.rel (0) target = $region5
    $region4: #{tpu_custom_call.1} parent=1 // pred_region
      _
    $region5: #{tpu_custom_call.1} parent=1 // pred_fallthru
      _
    // Predicated region
    $region6: #{tpu_custom_call.1} parent=1 // pred_check
      _
    $region7: #{tpu_custom_call.1} parent=1 // pred_check_branch
      %20 = sbr.rel (0) target = $region9
    $region8: #{tpu_custom_call.1} parent=1 // pred_region
      _
    $region9: #{tpu_custom_call.1} parent=1 // pred_fallthru
      _
    // Predicated region
    $region10: #{tpu_custom_call.1} parent=1 // pred_check
      _
    $region11: #{tpu_custom_call.1} parent=1 // pred_check_branch
      %22 = sbr.rel (0) target = $region13
    $region12: #{tpu_custom_call.1} parent=1 // pred_region
      _
    $region13: #{tpu_custom_call.1} parent=1 // pred_fallthru
      _
    // Predicated region
    $region14: #{tpu_custom_call.1} parent=1 // pred_check
      _
    $region15: #{tpu_custom_call.1} parent=1 // pred_check_branch
      %24 = sbr.rel (0) target = $region17
    $region16: #{tpu_custom_call.1} parent=1 // pred_region
      _
    $region17: #{tpu_custom_call.1} parent=1 // pred_fallthru
      _
    // Predicated region
    $region18: #{tpu_custom_call.1} parent=1 // pred_check
      _
    $region19: #{tpu_custom_call.1} parent=1 // pred_check_branch
      %26 = sbr.rel (0) target = $region21
    $region20: #{tpu_custom_call.1} parent=1 // pred_region
      _
    $region21: #{tpu_custom_call.1} parent=1 // pred_fallthru
      _
    // Predicated region
    $region22: #{tpu_custom_call.1} parent=1 // pred_check
      _
    $region23: #{tpu_custom_call.1} parent=1 // pred_check_branch
      %28 = sbr.rel (0) target = $region25
    $region24: #{tpu_custom_call.1} parent=1 // pred_region
      _
    $region25: #{tpu_custom_call.1} parent=1 // pred_fallthru
      _
    // Predicated region
    $region26: #{tpu_custom_call.1} parent=1 // pred_check
      _
    $region27: #{tpu_custom_call.1} parent=1 // pred_check_branch
      %30 = sbr.rel (0) target = $region29
    $region28: #{tpu_custom_call.1} parent=1 // pred_region
      _
    $region29: #{tpu_custom_call.1} parent=1 // pred_fallthru
      _
    // Predicated region
    $region30: #{tpu_custom_call.1} parent=1 // pred_check
      _
    $region31: #{tpu_custom_call.1} parent=1 // pred_check_branch
      %32 = sbr.rel (0) target = $region33
    $region32: #{tpu_custom_call.1} parent=1 // pred_region
      _
    $region33: #{tpu_custom_call.1} parent=1 // pred_fallthru
      _
    // Predicated region
    $region34: #{tpu_custom_call.1} parent=1 // pred_check
      _
    $region35: #{tpu_custom_call.1} parent=1 // pred_check_branch
      %34 = sbr.rel (0) target = $region37
    $region36: #{tpu_custom_call.1} parent=1 // pred_region
      _
    $region37: #{tpu_custom_call.1} parent=1 // pred_fallthru
      _
    // Predicated region
    $region38: #{tpu_custom_call.1} parent=1 // pred_check
      _
    $region39: #{tpu_custom_call.1} parent=1 // pred_check_branch
      %36 = sbr.rel (0) target = $region41
    $region40: #{tpu_custom_call.1} parent=1 // pred_region
      _
    $region41: #{tpu_custom_call.1} parent=1 // pred_fallthru
      _
    // Predicated region
    $region42: #{tpu_custom_call.1} parent=1 // pred_check
      _
    $region43: #{tpu_custom_call.1} parent=1 // pred_check_branch
      %38 = sbr.rel (0) target = $region45
    $region44: #{tpu_custom_call.1} parent=1 // pred_region
      _
    $region45: #{tpu_custom_call.1} parent=1 // pred_fallthru
      _
    %v39 = vld [vmem:[%s0] sm:$0xff]
    %v40 = vld [vmem:[%s0 + $0x8] sm:$0xff]
    %v41 = vld [vmem:[%s1] sm:$0xff]
    %v42 = vld [vmem:[%s1 + $0x8] sm:$0xff]
    %v43 = vld [vmem:[%s1 + $0x10] sm:$0xff]
    %v44 = vld [vmem:[%s1 + $0x18] sm:$0xff]
    %v45 = vld [vmem:[%s1 + $0x20] sm:$0xff]
    %v46 = vld [vmem:[%s1 + $0x28] sm:$0xff]
    %v47 = vld [vmem:[%s1 + $0x30] sm:$0xff]
    %v48 = vld [vmem:[%s1 + $0x38] sm:$0xff]
    %v49 = vld [vmem:[%s1 + $0x40] sm:$0xff]
    %v50 = vld [vmem:[%s1 + $0x48] sm:$0xff]
    %v51 = vld [vmem:[%s1 + $0x50] sm:$0xff]
    %v52 = vld [vmem:[%s1 + $0x58] sm:$0xff]
    %v53 = vld [vmem:[%s1 + $0x60] sm:$0xff]
    %v54 = vld [vmem:[%s1 + $0x68] sm:$0xff]
    %v55 = vld [vmem:[%s1 + $0x70] sm:$0xff]
    %v56 = vld [vmem:[%s1 + $0x78] sm:$0xff]
    %v57 = vld [vmem:[%s1 + $0x80] sm:$0xff]
    %v58 = vld [vmem:[%s1 + $0x88] sm:$0xff]
    %v59 = vld [vmem:[%s1 + $0x90] sm:$0xff]
    %v60 = vld [vmem:[%s1 + $0x98] sm:$0xff]
    %v61 = vld [vmem:[%s1 + $0xa0] sm:$0xff]
    %v62 = vld [vmem:[%s1 + $0xa8] sm:$0xff]
    %v63 = vld [vmem:[%s1 + $0xb0] sm:$0xff]
    %v64 = vld [vmem:[%s1 + $0xb8] sm:$0xff]
    %v65 = vld [vmem:[%s1 + $0xc0] sm:$0xff]
    %v66 = vld [vmem:[%s1 + $0xc8] sm:$0xff]
    %v67 = vld [vmem:[%s1 + $0xd0] sm:$0xff]
    %v68 = vld [vmem:[%s1 + $0xd8] sm:$0xff]
    %v69 = vld [vmem:[%s1 + $0xe0] sm:$0xff]
    %v70 = vld [vmem:[%s1 + $0xe8] sm:$0xff]
    %v71 = vld [vmem:[%s1 + $0xf0] sm:$0xff]
    %v72 = vld [vmem:[%s1 + $0xf8] sm:$0xff]
    %v73 = vld [vmem:[%s1 + $0x100] sm:$0xff]
    %v74 = vld [vmem:[%s1 + $0x108] sm:$0xff]
    %v75 = vld [vmem:[%s1 + $0x110] sm:$0xff]
    %v76 = vld [vmem:[%s1 + $0x118] sm:$0xff]
    %v77 = vld [vmem:[%s1 + $0x120] sm:$0xff]
    %v78 = vld [vmem:[%s1 + $0x128] sm:$0xff]
    %v79 = vld [vmem:[%s1 + $0x130] sm:$0xff]
    %v80 = vld [vmem:[%s1 + $0x138] sm:$0xff]
    %v81 = vld [vmem:[%s1 + $0x140] sm:$0xff]
    %v82 = vld [vmem:[%s1 + $0x148] sm:$0xff]
    %v83 = vld [vmem:[%s2] sm:$0x3]
    %v85 = vlaneseq
    %v86 = vshrl.u32 %v85, 7
    %v87 = vsub.s32 0, %v86
    %v88 = vrot.slane %v83, %v87
    %v89 = vlaneseq
    %v90 = vshrl.u32 %v89, 7
    %v91 = vsub.s32 1, %v90
    %v92 = vrot.slane %v83, %v91
    %vm95 = vcmask 326656
    %v97 = vsel %vm95, %v40, 0
    %99 = vmatprep.subr.mxu0 %v72
    %100 = vmatpush1.msra.mxu0 %v71
    %101 = vmatprep.subr.mxu0 %v70
    %102 = vmatpush1.msra.mxu0 %v69
    %103 = vmatprep.subr.mxu0 %v68
    %104 = vmatpush1.msra.mxu0 %v67
    %105 = vmatprep.subr.mxu0 %v66
    %106 = vmatpush1.msra.mxu0 %v65
    %107 = vmatprep.subr.mxu0 %v64
    %108 = vmatpush1.msra.mxu0 %v63
    %109 = vmatprep.subr.mxu0 %v62
    %110 = vmatpush1.msra.mxu0 %v61
    %111 = vmatprep.subr.mxu0 %v60
    %112 = vmatpush1.msra.mxu0 %v59
    %113 = vmatprep.subr.mxu0 %v58
    %114 = vmatpush1.msra.mxu0 %v57
    %115 = vmatprep.subr.mxu0 %v56
    %116 = vmatpush1.msra.mxu0 %v55
    %117 = vmatprep.subr.mxu0 %v54
    %118 = vmatpush1.msra.mxu0 %v53
    %119 = vmatprep.subr.mxu0 %v52
    %120 = vmatpush1.msra.mxu0 %v51
    %121 = vmatprep.subr.mxu0 %v50
    %122 = vmatpush1.msra.mxu0 %v49
    %123 = vmatprep.subr.mxu0 %v48
    %124 = vmatpush1.msra.mxu0 %v47
    %125 = vmatprep.subr.mxu0 %v46
    %126 = vmatpush1.msra.mxu0 %v45
    %127 = vmatprep.subr.mxu0 %v44
    %128 = vmatpush1.msra.mxu0 %v43
    %129 = vmatprep.subr.mxu0 %v42
    %130 = vmatpush1.msra.mxu0 %v41
    %131 = vmatprep.subr.mxu0 0.0
    %132 = vmatpush2.msra.mxu0 0.0
    %133 = vmatprep.subr.mxu0 0.0
    %134 = vmatpush2.msra.mxu0 0.0
    %135 = vmatprep.subr.mxu0 0.0
    %136 = vmatpush2.msra.mxu0 0.0
    %137 = vmatprep.subr.mxu0 0.0
    %138 = vmatpush2.msra.mxu0 0.0
    %139 = vmatprep.subr.mxu0 0.0
    %140 = vmatpush2.msra.mxu0 0.0
    %141 = vmatprep.subr.mxu0 0.0
    %142 = vmatpush2.msra.mxu0 0.0
    %143 = vmatprep.subr.mxu0 0.0
    %144 = vmatpush2.msra.mxu0 0.0
    %145 = vmatprep.subr.mxu0 0.0
    %146 = vmatpush2.msra.mxu0 0.0
    %147 = vmatprep.subr.mxu0 0.0
    %148 = vmatpush2.msra.mxu0 0.0
    %149 = vmatprep.subr.mxu0 0.0
    %150 = vmatpush2.msra.mxu0 0.0
    %151 = vmatprep.subr.mxu0 0.0
    %152 = vmatpush2.msra.mxu0 0.0
    %153 = vmatprep.subr.mxu0 %v82
    %154 = vmatpush2.msra.mxu0 %v81
    %155 = vmatprep.subr.mxu0 %v80
    %156 = vmatpush2.msra.mxu0 %v79
    %157 = vmatprep.subr.mxu0 %v78
    %158 = vmatpush2.msra.mxu0 %v77
    %159 = vmatprep.subr.mxu0 %v76
    %160 = vmatpush2.msra.mxu0 %v75
    %161 = vmatprep.subr.mxu0 %v74
    %162 = vmatpush2.msra.mxu0 %v73
    %163 = vmatprep.mubr.f32.mxu0 %v97
    %164 = vmatmul.mubr.f32.gmra.mxu0 %v39
    %v165 = vpop.f32.mrf.mxu0
    %v166 = vadd.f32 %v88, %v165
    %v167 = vpop.f32.mrf.mxu0
    %v168 = vadd.f32 %v92, %v167
    %169 = vdwg.mxu0
    %v170 = vtanh.pop %v166
    %v171 = vtanh.pop %v168
    %v172 = vld [vmem:[%s3] sm:$0xff]
    %v173 = vld [vmem:[%s3 + $0x8] sm:$0xff]
    %v174 = vld [vmem:[%s3 + $0x10] sm:$0xff]
    %v175 = vld [vmem:[%s3 + $0x18] sm:$0xff]
    %v176 = vld [vmem:[%s3 + $0x20] sm:$0xff]
    %v177 = vld [vmem:[%s3 + $0x28] sm:$0xff]
    %v178 = vld [vmem:[%s3 + $0x30] sm:$0xff]
    %v179 = vld [vmem:[%s3 + $0x38] sm:$0xff]
    %v180 = vld [vmem:[%s3 + $0x40] sm:$0xff]
    %v181 = vld [vmem:[%s3 + $0x48] sm:$0xff]
    %v182 = vld [vmem:[%s3 + $0x50] sm:$0xff]
    %v183 = vld [vmem:[%s3 + $0x58] sm:$0xff]
    %v184 = vld [vmem:[%s3 + $0x60] sm:$0xff]
    %v185 = vld [vmem:[%s3 + $0x68] sm:$0xff]
    %v186 = vld [vmem:[%s3 + $0x70] sm:$0xff]
    %v187 = vld [vmem:[%s3 + $0x78] sm:$0xff]
    %v188 = vld [vmem:[%s3 + $0x80] sm:$0xff]
    %v189 = vld [vmem:[%s3 + $0x88] sm:$0xff]
    %v190 = vld [vmem:[%s3 + $0x90] sm:$0xff]
    %v191 = vld [vmem:[%s3 + $0x98] sm:$0xff]
    %v192 = vld [vmem:[%s3 + $0xa0] sm:$0xff]
    %v193 = vld [vmem:[%s3 + $0xa8] sm:$0xff]
    %v194 = vld [vmem:[%s3 + $0xb0] sm:$0xff]
    %v195 = vld [vmem:[%s3 + $0xb8] sm:$0xff]
    %v196 = vld [vmem:[%s3 + $0xc0] sm:$0xff]
    %v197 = vld [vmem:[%s4] sm:$0x1]
    %v199 = vlaneseq
    %v200 = vshrl.u32 %v199, 7
    %v201 = vsub.s32 0, %v200
    %v202 = vrot.slane %v197, %v201
    %vm204 = vcmask 588800
    %v206 = vsel %vm204, %v171, 0
    %208 = vmatprep.subr.mxu0 0.0
    %209 = vmatpush1.msra.mxu0 %v187
    %210 = vmatprep.subr.mxu0 0.0
    %211 = vmatpush1.msra.mxu0 %v186
    %212 = vmatprep.subr.mxu0 0.0
    %213 = vmatpush1.msra.mxu0 %v185
    %214 = vmatprep.subr.mxu0 0.0
    %215 = vmatpush1.msra.mxu0 %v184
    %216 = vmatprep.subr.mxu0 0.0
    %217 = vmatpush1.msra.mxu0 %v183
    %218 = vmatprep.subr.mxu0 0.0
    %219 = vmatpush1.msra.mxu0 %v182
    %220 = vmatprep.subr.mxu0 0.0
    %221 = vmatpush1.msra.mxu0 %v181
    %222 = vmatprep.subr.mxu0 0.0
    %223 = vmatpush1.msra.mxu0 %v180
    %224 = vmatprep.subr.mxu0 0.0
    %225 = vmatpush1.msra.mxu0 %v179
    %226 = vmatprep.subr.mxu0 0.0
    %227 = vmatpush1.msra.mxu0 %v178
    %228 = vmatprep.subr.mxu0 0.0
    %229 = vmatpush1.msra.mxu0 %v177
    %230 = vmatprep.subr.mxu0 0.0
    %231 = vmatpush1.msra.mxu0 %v176
    %232 = vmatprep.subr.mxu0 0.0
    %233 = vmatpush1.msra.mxu0 %v175
    %234 = vmatprep.subr.mxu0 0.0
    %235 = vmatpush1.msra.mxu0 %v174
    %236 = vmatprep.subr.mxu0 0.0
    %237 = vmatpush1.msra.mxu0 %v173
    %238 = vmatprep.subr.mxu0 0.0
    %239 = vmatpush1.msra.mxu0 %v172
    %240 = vmatprep.subr.mxu0 0.0
    %241 = vmatpush2.msra.mxu0 0.0
    %242 = vmatprep.subr.mxu0 0.0
    %243 = vmatpush2.msra.mxu0 0.0
    %244 = vmatprep.subr.mxu0 0.0
    %245 = vmatpush2.msra.mxu0 0.0
    %246 = vmatprep.subr.mxu0 0.0
    %247 = vmatpush2.msra.mxu0 0.0
    %248 = vmatprep.subr.mxu0 0.0
    %249 = vmatpush2.msra.mxu0 0.0
    %250 = vmatprep.subr.mxu0 0.0
    %251 = vmatpush2.msra.mxu0 0.0
    %252 = vmatprep.subr.mxu0 0.0
    %253 = vmatpush2.msra.mxu0 0.0
    %254 = vmatprep.subr.mxu0 0.0
    %255 = vmatpush2.msra.mxu0 %v196
    %256 = vmatprep.subr.mxu0 0.0
    %257 = vmatpush2.msra.mxu0 %v195
    %258 = vmatprep.subr.mxu0 0.0
    %259 = vmatpush2.msra.mxu0 %v194
    %260 = vmatprep.subr.mxu0 0.0
    %261 = vmatpush2.msra.mxu0 %v193
    %262 = vmatprep.subr.mxu0 0.0
    %263 = vmatpush2.msra.mxu0 %v192
    %264 = vmatprep.subr.mxu0 0.0
    %265 = vmatpush2.msra.mxu0 %v191
    %266 = vmatprep.subr.mxu0 0.0
    %267 = vmatpush2.msra.mxu0 %v190
    %268 = vmatprep.subr.mxu0 0.0
    %269 = vmatpush2.msra.mxu0 %v189
    %270 = vmatprep.subr.mxu0 0.0
    %271 = vmatpush2.msra.mxu0 %v188
    %272 = vmatprep.mubr.f32.mxu0 %v206
    %273 = vmatmul.mubr.f32.gmra.mxu0 %v170
    %v274 = vpop.f32.mrf.mxu0
    %v275 = vadd.f32 %v202, %v274
    %v276 = vpop.f32.mrf.mxu0
    %277 = vdwg.mxu0
    %v278 = vtanh.pop %v275
    %v279 = vld [vmem:[%s5] sm:$0xff]
    %v280 = vld [vmem:[%s5 + $0x8] sm:$0xff]
    %v281 = vld [vmem:[%s5 + $0x10] sm:$0xff]
    %v282 = vld [vmem:[%s5 + $0x18] sm:$0xff]
    %v283 = vld [vmem:[%s5 + $0x20] sm:$0xff]
    %v284 = vld [vmem:[%s5 + $0x28] sm:$0xff]
    %v285 = vld [vmem:[%s5 + $0x30] sm:$0xff]
    %v286 = vld [vmem:[%s5 + $0x38] sm:$0xff]
    %v287 = vld [vmem:[%s5 + $0x40] sm:$0xff]
    %v288 = vld [vmem:[%s5 + $0x48] sm:$0xff]
    %v289 = vld [vmem:[%s5 + $0x50] sm:$0xff]
    %v290 = vld [vmem:[%s5 + $0x58] sm:$0xff]
    %v291 = vld [vmem:[%s5 + $0x60] sm:$0x3]
    %v292 = vld [vmem:[%s5 + $0x68] sm:$0x3]
    %v293 = vld [vmem:[%s6] sm:$0x3]
    %v295 = vlaneseq
    %v296 = vshrl.u32 %v295, 7
    %v297 = vsub.s32 0, %v296
    %v298 = vrot.slane %v293, %v297
    %v299 = vlaneseq
    %v300 = vshrl.u32 %v299, 7
    %v301 = vsub.s32 1, %v300
    %v302 = vrot.slane %v293, %v301
    %vm305 = vcmask 408576
    %v307 = vsel %vm305, %v278, 0
    %vm309 = vcmask 1041408
    %v311 = vsel %vm309, %v291, 0
    %v314 = vsel %vm309, %v292, 0
    %316 = vmatprep.subr.mxu0 0.0
    %317 = vmatpush1.msra.mxu0 0.0
    %318 = vmatprep.subr.mxu0 0.0
    %319 = vmatpush1.msra.mxu0 0.0
    %320 = vmatprep.subr.mxu0 0.0
    %321 = vmatpush1.msra.mxu0 0.0
    %322 = vmatprep.subr.mxu0 0.0
    %323 = vmatpush1.msra.mxu0 0.0
    %324 = vmatprep.subr.mxu0 0.0
    %325 = vmatpush1.msra.mxu0 0.0
    %326 = vmatprep.subr.mxu0 0.0
    %327 = vmatpush1.msra.mxu0 0.0
    %328 = vmatprep.subr.mxu0 0.0
    %329 = vmatpush1.msra.mxu0 0.0
    %330 = vmatprep.subr.mxu0 0.0
    %331 = vmatpush1.msra.mxu0 0.0
    %332 = vmatprep.subr.mxu0 0.0
    %333 = vmatpush1.msra.mxu0 0.0
    %334 = vmatprep.subr.mxu0 %v314
    %335 = vmatpush1.msra.mxu0 %v311
    %336 = vmatprep.subr.mxu0 %v290
    %337 = vmatpush1.msra.mxu0 %v289
    %338 = vmatprep.subr.mxu0 %v288
    %339 = vmatpush1.msra.mxu0 %v287
    %340 = vmatprep.subr.mxu0 %v286
    %341 = vmatpush1.msra.mxu0 %v285
    %342 = vmatprep.subr.mxu0 %v284
    %343 = vmatpush1.msra.mxu0 %v283
    %344 = vmatprep.subr.mxu0 %v282
    %345 = vmatpush1.msra.mxu0 %v281
    %346 = vmatprep.subr.mxu0 %v280
    %347 = vmatpush1.msra.mxu0 %v279
    %348 = vmatprep.subr.mxu0 0.0
    %349 = vmatpush2.msra.mxu0 0.0
    %350 = vmatprep.subr.mxu0 0.0
    %351 = vmatpush2.msra.mxu0 0.0
    %352 = vmatprep.subr.mxu0 0.0
    %353 = vmatpush2.msra.mxu0 0.0
    %354 = vmatprep.subr.mxu0 0.0
    %355 = vmatpush2.msra.mxu0 0.0
    %356 = vmatprep.subr.mxu0 0.0
    %357 = vmatpush2.msra.mxu0 0.0
    %358 = vmatprep.subr.mxu0 0.0
    %359 = vmatpush2.msra.mxu0 0.0
    %360 = vmatprep.subr.mxu0 0.0
    %361 = vmatpush2.msra.mxu0 0.0
    %362 = vmatprep.subr.mxu0 0.0
    %363 = vmatpush2.msra.mxu0 0.0
    %364 = vmatprep.subr.mxu0 0.0
    %365 = vmatpush2.msra.mxu0 0.0
    %366 = vmatprep.subr.mxu0 0.0
    %367 = vmatpush2.msra.mxu0 0.0
    %368 = vmatprep.subr.mxu0 0.0
    %369 = vmatpush2.msra.mxu0 0.0
    %370 = vmatprep.subr.mxu0 0.0
    %371 = vmatpush2.msra.mxu0 0.0
    %372 = vmatprep.subr.mxu0 0.0
    %373 = vmatpush2.msra.mxu0 0.0
    %374 = vmatprep.subr.mxu0 0.0
    %375 = vmatpush2.msra.mxu0 0.0
    %376 = vmatprep.subr.mxu0 0.0
    %377 = vmatpush2.msra.mxu0 0.0
    %378 = vmatprep.subr.mxu0 0.0
    %379 = vmatpush2.msra.mxu0 0.0
    %380 = vmatprep.mubr.f32.mxu0 0.0
    %381 = vmatmul.mubr.f32.gmra.mxu0 %v307
    %v382 = vpop.f32.mrf.mxu0
    %v383 = vadd.f32 %v298, %v382
    %v384 = vpop.f32.mrf.mxu0
    %v385 = vadd.f32 %v302, %v384
    %386 = vdwg.mxu0
    %v387 = vtanh.pop %v383
    %v388 = vtanh.pop %v385
    %v389 = vld [vmem:[%s7] sm:$0xff]
    %v390 = vld [vmem:[%s7 + $0x8] sm:$0xff]
    %v391 = vld [vmem:[%s7 + $0x10] sm:$0xff]
    %v392 = vld [vmem:[%s7 + $0x18] sm:$0xff]
    %v393 = vld [vmem:[%s7 + $0x20] sm:$0xff]
    %v394 = vld [vmem:[%s7 + $0x28] sm:$0xff]
    %v395 = vld [vmem:[%s7 + $0x30] sm:$0xff]
    %v396 = vld [vmem:[%s7 + $0x38] sm:$0xff]
    %v397 = vld [vmem:[%s7 + $0x40] sm:$0xff]
    %v398 = vld [vmem:[%s7 + $0x48] sm:$0xff]
    %v399 = vld [vmem:[%s7 + $0x50] sm:$0xff]
    %v400 = vld [vmem:[%s7 + $0x58] sm:$0xff]
    %v401 = vld [vmem:[%s7 + $0x60] sm:$0xff]
    %v402 = vld [vmem:[%s7 + $0x68] sm:$0xff]
    %v403 = vld [vmem:[%s7 + $0x70] sm:$0xff]
    %v404 = vld [vmem:[%s7 + $0x78] sm:$0xff]
    %v405 = vld [vmem:[%s7 + $0x80] sm:$0xff]
    %v406 = vld [vmem:[%s7 + $0x88] sm:$0xff]
    %v407 = vld [vmem:[%s7 + $0x90] sm:$0xff]
    %v408 = vld [vmem:[%s7 + $0x98] sm:$0xff]
    %v409 = vld [vmem:[%s7 + $0xa0] sm:$0xff]
    %v410 = vld [vmem:[%s7 + $0xa8] sm:$0xff]
    %v411 = vld [vmem:[%s7 + $0xb0] sm:$0xff]
    %v412 = vld [vmem:[%s7 + $0xb8] sm:$0xff]
    %v413 = vld [vmem:[%s7 + $0xc0] sm:$0xff]
    %v414 = vld [vmem:[%s7 + $0xc8] sm:$0xff]
    %v415 = vld [vmem:[%s7 + $0xd0] sm:$0xff]
    %v416 = vld [vmem:[%s7 + $0xd8] sm:$0xff]
    %v417 = vld [vmem:[%s7 + $0xe0] sm:$0xff]
    %v418 = vld [vmem:[%s7 + $0xe8] sm:$0xff]
    %v419 = vld [vmem:[%s7 + $0xf0] sm:$0xff]
    %v420 = vld [vmem:[%s7 + $0xf8] sm:$0xff]
    %v421 = vld [vmem:[%s7 + $0x100] sm:$0xff]
    %v422 = vld [vmem:[%s7 + $0x108] sm:$0xff]
    %v423 = vld [vmem:[%s7 + $0x110] sm:$0xff]
    %v424 = vld [vmem:[%s7 + $0x118] sm:$0xff]
    %v425 = vld [vmem:[%s7 + $0x120] sm:$0xff]
    %v426 = vld [vmem:[%s7 + $0x128] sm:$0xff]
    %v427 = vld [vmem:[%s7 + $0x130] sm:$0xff]
    %v428 = vld [vmem:[%s7 + $0x138] sm:$0xff]
    %v429 = vld [vmem:[%s7 + $0x140] sm:$0xff]
    %v430 = vld [vmem:[%s7 + $0x148] sm:$0xff]
    %v431 = vld [vmem:[%s7 + $0x150] sm:$0xff]
    %v432 = vld [vmem:[%s7 + $0x158] sm:$0xff]
    %v433 = vld [vmem:[%s7 + $0x160] sm:$0xff]
    %v434 = vld [vmem:[%s7 + $0x168] sm:$0xff]
    %v435 = vld [vmem:[%s7 + $0x170] sm:$0xff]
    %v436 = vld [vmem:[%s7 + $0x178] sm:$0xff]
    %v437 = vld [vmem:[%s7 + $0x180] sm:$0xff]
    %v438 = vld [vmem:[%s7 + $0x188] sm:$0xff]
    %v439 = vld [vmem:[%s8] sm:$0x3]
    %v441 = vlaneseq
    %v442 = vshrl.u32 %v441, 7
    %v443 = vsub.s32 0, %v442
    %v444 = vrot.slane %v439, %v443
    %v445 = vlaneseq
    %v446 = vshrl.u32 %v445, 7
    %v447 = vsub.s32 1, %v446
    %v448 = vrot.slane %v439, %v447
    %v452 = vsel %vm204, %v388, 0
    %454 = vmatprep.subr.mxu0 %v420
    %455 = vmatpush1.msra.mxu0 %v419
    %456 = vmatprep.subr.mxu0 %v418
    %457 = vmatpush1.msra.mxu0 %v417
    %458 = vmatprep.subr.mxu0 %v416
    %459 = vmatpush1.msra.mxu0 %v415
    %460 = vmatprep.subr.mxu0 %v414
    %461 = vmatpush1.msra.mxu0 %v413
    %462 = vmatprep.subr.mxu0 %v412
    %463 = vmatpush1.msra.mxu0 %v411
    %464 = vmatprep.subr.mxu0 %v410
    %465 = vmatpush1.msra.mxu0 %v409
    %466 = vmatprep.subr.mxu0 %v408
    %467 = vmatpush1.msra.mxu0 %v407
    %468 = vmatprep.subr.mxu0 %v406
    %469 = vmatpush1.msra.mxu0 %v405
    %470 = vmatprep.subr.mxu0 %v404
    %471 = vmatpush1.msra.mxu0 %v403
    %472 = vmatprep.subr.mxu0 %v402
    %473 = vmatpush1.msra.mxu0 %v401
    %474 = vmatprep.subr.mxu0 %v400
    %475 = vmatpush1.msra.mxu0 %v399
    %476 = vmatprep.subr.mxu0 %v398
    %477 = vmatpush1.msra.mxu0 %v397
    %478 = vmatprep.subr.mxu0 %v396
    %479 = vmatpush1.msra.mxu0 %v395
    %480 = vmatprep.subr.mxu0 %v394
    %481 = vmatpush1.msra.mxu0 %v393
    %482 = vmatprep.subr.mxu0 %v392
    %483 = vmatpush1.msra.mxu0 %v391
    %484 = vmatprep.subr.mxu0 %v390
    %485 = vmatpush1.msra.mxu0 %v389
    %486 = vmatprep.subr.mxu0 0.0
    %487 = vmatpush2.msra.mxu0 0.0
    %488 = vmatprep.subr.mxu0 0.0
    %489 = vmatpush2.msra.mxu0 0.0
    %490 = vmatprep.subr.mxu0 0.0
    %491 = vmatpush2.msra.mxu0 0.0
    %492 = vmatprep.subr.mxu0 0.0
    %493 = vmatpush2.msra.mxu0 0.0
    %494 = vmatprep.subr.mxu0 0.0
    %495 = vmatpush2.msra.mxu0 0.0
    %496 = vmatprep.subr.mxu0 0.0
    %497 = vmatpush2.msra.mxu0 0.0
    %498 = vmatprep.subr.mxu0 0.0
    %499 = vmatpush2.msra.mxu0 0.0
    %500 = vmatprep.subr.mxu0 %v438
    %501 = vmatpush2.msra.mxu0 %v437
    %502 = vmatprep.subr.mxu0 %v436
    %503 = vmatpush2.msra.mxu0 %v435
    %504 = vmatprep.subr.mxu0 %v434
    %505 = vmatpush2.msra.mxu0 %v433
    %506 = vmatprep.subr.mxu0 %v432
    %507 = vmatpush2.msra.mxu0 %v431
    %508 = vmatprep.subr.mxu0 %v430
    %509 = vmatpush2.msra.mxu0 %v429
    %510 = vmatprep.subr.mxu0 %v428
    %511 = vmatpush2.msra.mxu0 %v427
    %512 = vmatprep.subr.mxu0 %v426
    %513 = vmatpush2.msra.mxu0 %v425
    %514 = vmatprep.subr.mxu0 %v424
    %515 = vmatpush2.msra.mxu0 %v423
    %516 = vmatprep.subr.mxu0 %v422
    %517 = vmatpush2.msra.mxu0 %v421
    %518 = vmatprep.mubr.f32.mxu0 %v452
    %519 = vmatmul.mubr.f32.gmra.mxu0 %v387
    %v520 = vpop.f32.mrf.mxu0
    %v521 = vadd.f32 %v444, %v520
    %v522 = vpop.f32.mrf.mxu0
    %v523 = vadd.f32 %v448, %v522
    %524 = vdwg.mxu0
    %v525 = vsel %vm95, %v523, -inf
    %v526 = vmax.f32 %v521, %v525
    %527 = vmax.xlane.f32.xlu0 %v526
    %v528 = vpop.xlane.xlu0 %527
    %v529 = vsub.f32 %v521, %v528
    %v530 = vsub.f32 %v523, %v528
    %v531 = vmul.f32 %v529, 1.442695
    %v532 = vpow.pop %v531
    %v533 = vmul.f32 %v530, 1.442695
    %v534 = vpow.pop %v533
    %v535 = vld [vmem:[%s9] sm:$0xff]
    %v536 = vld [vmem:[%s9 + $0x8] sm:$0xff]
    %v537 = vld [vmem:[%s9 + $0x10] sm:$0xff]
    %v538 = vld [vmem:[%s9 + $0x18] sm:$0xff]
    %v539 = vld [vmem:[%s9 + $0x20] sm:$0xff]
    %v540 = vld [vmem:[%s9 + $0x28] sm:$0xff]
    %v541 = vld [vmem:[%s9 + $0x30] sm:$0xff]
    %v542 = vld [vmem:[%s9 + $0x38] sm:$0xff]
    %v543 = vld [vmem:[%s9 + $0x40] sm:$0xff]
    %v544 = vld [vmem:[%s9 + $0x48] sm:$0xff]
    %v545 = vld [vmem:[%s9 + $0x50] sm:$0xff]
    %v546 = vld [vmem:[%s9 + $0x58] sm:$0xff]
    %v547 = vld [vmem:[%s9 + $0x60] sm:$0xff]
    %v548 = vld [vmem:[%s9 + $0x68] sm:$0xff]
    %v549 = vld [vmem:[%s9 + $0x70] sm:$0xff]
    %v550 = vld [vmem:[%s9 + $0x78] sm:$0xff]
    %v551 = vld [vmem:[%s9 + $0x80] sm:$0xff]
    %v552 = vld [vmem:[%s9 + $0x88] sm:$0xff]
    %v553 = vld [vmem:[%s9 + $0x90] sm:$0xff]
    %v554 = vld [vmem:[%s9 + $0x98] sm:$0xff]
    %v555 = vld [vmem:[%s9 + $0xa0] sm:$0xff]
    %v557 = vsel %vm95, %v534, 0
    %559 = vmatprep.subr.mxu0 0.0
    %560 = vmatpush1.msra.mxu0 %v550
    %561 = vmatprep.subr.mxu0 0.0
    %562 = vmatpush1.msra.mxu0 %v549
    %563 = vmatprep.subr.mxu0 0.0
    %564 = vmatpush1.msra.mxu0 %v548
    %565 = vmatprep.subr.mxu0 0.0
    %566 = vmatpush1.msra.mxu0 %v547
    %567 = vmatprep.subr.mxu0 0.0
    %568 = vmatpush1.msra.mxu0 %v546
    %569 = vmatprep.subr.mxu0 0.0
    %570 = vmatpush1.msra.mxu0 %v545
    %571 = vmatprep.subr.mxu0 0.0
    %572 = vmatpush1.msra.mxu0 %v544
    %573 = vmatprep.subr.mxu0 0.0
    %574 = vmatpush1.msra.mxu0 %v543
    %575 = vmatprep.subr.mxu0 0.0
    %576 = vmatpush1.msra.mxu0 %v542
    %577 = vmatprep.subr.mxu0 0.0
    %578 = vmatpush1.msra.mxu0 %v541
    %579 = vmatprep.subr.mxu0 0.0
    %580 = vmatpush1.msra.mxu0 %v540
    %581 = vmatprep.subr.mxu0 0.0
    %582 = vmatpush1.msra.mxu0 %v539
    %583 = vmatprep.subr.mxu0 0.0
    %584 = vmatpush1.msra.mxu0 %v538
    %585 = vmatprep.subr.mxu0 0.0
    %586 = vmatpush1.msra.mxu0 %v537
    %587 = vmatprep.subr.mxu0 0.0
    %588 = vmatpush1.msra.mxu0 %v536
    %589 = vmatprep.subr.mxu0 0.0
    %590 = vmatpush1.msra.mxu0 %v535
    %591 = vmatprep.subr.mxu0 0.0
    %592 = vmatpush2.msra.mxu0 0.0
    %593 = vmatprep.subr.mxu0 0.0
    %594 = vmatpush2.msra.mxu0 0.0
    %595 = vmatprep.subr.mxu0 0.0
    %596 = vmatpush2.msra.mxu0 0.0
    %597 = vmatprep.subr.mxu0 0.0
    %598 = vmatpush2.msra.mxu0 0.0
    %599 = vmatprep.subr.mxu0 0.0
    %600 = vmatpush2.msra.mxu0 0.0
    %601 = vmatprep.subr.mxu0 0.0
    %602 = vmatpush2.msra.mxu0 0.0
    %603 = vmatprep.subr.mxu0 0.0
    %604 = vmatpush2.msra.mxu0 0.0
    %605 = vmatprep.subr.mxu0 0.0
    %606 = vmatpush2.msra.mxu0 0.0
    %607 = vmatprep.subr.mxu0 0.0
    %608 = vmatpush2.msra.mxu0 0.0
    %609 = vmatprep.subr.mxu0 0.0
    %610 = vmatpush2.msra.mxu0 0.0
    %611 = vmatprep.subr.mxu0 0.0
    %612 = vmatpush2.msra.mxu0 0.0
    %613 = vmatprep.subr.mxu0 0.0
    %614 = vmatpush2.msra.mxu0 %v555
    %615 = vmatprep.subr.mxu0 0.0
    %616 = vmatpush2.msra.mxu0 %v554
    %617 = vmatprep.subr.mxu0 0.0
    %618 = vmatpush2.msra.mxu0 %v553
    %619 = vmatprep.subr.mxu0 0.0
    %620 = vmatpush2.msra.mxu0 %v552
    %621 = vmatprep.subr.mxu0 0.0
    %622 = vmatpush2.msra.mxu0 %v551
    %623 = vmatprep.mubr.f32.mxu0 %v557
    %624 = vmatmul.mubr.f32.gmra.mxu0 %v532
    %v625 = vpop.f32.mrf.mxu0
    %v626 = vadd.f32 0.0, %v625
    %v627 = vpop.f32.mrf.mxu0
    %628 = vdwg.mxu0
    %v629 = vrcp.pop %v626
    %v630 = vld [vmem:[%s10] sm:$0xff]
    %v631 = vld [vmem:[%s10 + $0x8] sm:$0xff]
    %vm632 = vcmask 64512
    %v634 = vsel %vm632, %v629, 0
    %636 = vmatprep.subr.mxu0 0.0
    %637 = vmatpush1.msra.mxu0 0.0
    %638 = vmatprep.subr.mxu0 0.0
    %639 = vmatpush1.msra.mxu0 0.0
    %640 = vmatprep.subr.mxu0 0.0
    %641 = vmatpush1.msra.mxu0 0.0
    %642 = vmatprep.subr.mxu0 0.0
    %643 = vmatpush1.msra.mxu0 0.0
    %644 = vmatprep.subr.mxu0 0.0
    %645 = vmatpush1.msra.mxu0 0.0
    %646 = vmatprep.subr.mxu0 0.0
    %647 = vmatpush1.msra.mxu0 0.0
    %648 = vmatprep.subr.mxu0 0.0
    %649 = vmatpush1.msra.mxu0 0.0
    %650 = vmatprep.subr.mxu0 0.0
    %651 = vmatpush1.msra.mxu0 0.0
    %652 = vmatprep.subr.mxu0 0.0
    %653 = vmatpush1.msra.mxu0 0.0
    %654 = vmatprep.subr.mxu0 0.0
    %655 = vmatpush1.msra.mxu0 0.0
    %656 = vmatprep.subr.mxu0 0.0
    %657 = vmatpush1.msra.mxu0 0.0
    %658 = vmatprep.subr.mxu0 0.0
    %659 = vmatpush1.msra.mxu0 0.0
    %660 = vmatprep.subr.mxu0 0.0
    %661 = vmatpush1.msra.mxu0 0.0
    %662 = vmatprep.subr.mxu0 0.0
    %663 = vmatpush1.msra.mxu0 0.0
    %664 = vmatprep.subr.mxu0 0.0
    %665 = vmatpush1.msra.mxu0 0.0
    %666 = vmatprep.subr.mxu0 %v631
    %667 = vmatpush1.msra.mxu0 %v630
    %668 = vmatprep.subr.mxu0 0.0
    %669 = vmatpush2.msra.mxu0 0.0
    %670 = vmatprep.subr.mxu0 0.0
    %671 = vmatpush2.msra.mxu0 0.0
    %672 = vmatprep.subr.mxu0 0.0
    %673 = vmatpush2.msra.mxu0 0.0
    %674 = vmatprep.subr.mxu0 0.0
    %675 = vmatpush2.msra.mxu0 0.0
    %676 = vmatprep.subr.mxu0 0.0
    %677 = vmatpush2.msra.mxu0 0.0
    %678 = vmatprep.subr.mxu0 0.0
    %679 = vmatpush2.msra.mxu0 0.0
    %680 = vmatprep.subr.mxu0 0.0
    %681 = vmatpush2.msra.mxu0 0.0
    %682 = vmatprep.subr.mxu0 0.0
    %683 = vmatpush2.msra.mxu0 0.0
    %684 = vmatprep.subr.mxu0 0.0
    %685 = vmatpush2.msra.mxu0 0.0
    %686 = vmatprep.subr.mxu0 0.0
    %687 = vmatpush2.msra.mxu0 0.0
    %688 = vmatprep.subr.mxu0 0.0
    %689 = vmatpush2.msra.mxu0 0.0
    %690 = vmatprep.subr.mxu0 0.0
    %691 = vmatpush2.msra.mxu0 0.0
    %692 = vmatprep.subr.mxu0 0.0
    %693 = vmatpush2.msra.mxu0 0.0
    %694 = vmatprep.subr.mxu0 0.0
    %695 = vmatpush2.msra.mxu0 0.0
    %696 = vmatprep.subr.mxu0 0.0
    %697 = vmatpush2.msra.mxu0 0.0
    %698 = vmatprep.subr.mxu0 0.0
    %699 = vmatpush2.msra.mxu0 0.0
    %700 = vmatprep.mubr.f32.mxu0 0.0
    %701 = vmatmul.mubr.f32.gmra.mxu0 %v634
    %v702 = vpop.f32.mrf.mxu0
    %v703 = vadd.f32 0.0, %v702
    %v704 = vpop.f32.mrf.mxu0
    %v705 = vadd.f32 0.0, %v704
    %706 = vdwg.mxu0
    %v707 = vmul.f32 %v532, %v703
    %v708 = vmul.f32 %v534, %v705
    %709 = vst [vmem:[#allocation2] sm:$0xff] %v707
    %710 = vst.msk [vmem:[#allocation2 + $0x8] sm:$0xff] %vm95, %v708
    // Predicated region
    $region46: #{tpu_custom_call.1} parent=1 // pred_check
      _
    $region47: #{tpu_custom_call.1} parent=1 // pred_check_branch
      %712 = sbr.rel (0) target = $region49
    $region48: #{tpu_custom_call.1} parent=1 // pred_region
      %s714 = ssub.s32 256, 256
      %715 = vsyncadd [#allocation3], %s714
      %s717 = sshll.u32 [#allocation2], 4
      %s718 = int_to_ptr.vmem [resolvable:$true] %s717
      %720 = dma.vmem_to_hbm [thread:$0]  %s718, 256, %s11, [#allocation3]
    $region49: #{tpu_custom_call.1} parent=1 // pred_fallthru
      _
    // Predicated region
    $region50: #{tpu_custom_call.1} parent=1 // pred_check
      _
    $region51: #{tpu_custom_call.1} parent=1 // pred_check_branch
      %722 = sbr.rel (0) target = $region53
    $region52: #{tpu_custom_call.1} parent=1 // pred_region
      %723 = dma.done [#allocation3], 256
    $region53: #{tpu_custom_call.1} parent=1 // pred_fallthru
      _
    %724 = vsyncpa [#allocation3], 1

</llo_original>
